<compile_context>
chip_gen: v7x
topology: tpu7x:2x2x1
jax: 0.10.0
libtpu: 0.0.40
codegen_flags: <defaults>
</compile_context>

<pallas_src>
import math

import jax
import jax.numpy as jnp
from jax.experimental import pallas as pl
from jax.experimental.pallas import tpu as pltpu


# ----------------------------------------------------------------------------
# Helpers
# ----------------------------------------------------------------------------
def _single_buffered_spec(block_shape, index_map):
    """BlockSpec for a constant-index block; single-buffer it when supported."""
    if hasattr(pl, "Buffered"):
        try:
            return pl.BlockSpec(block_shape, index_map,
                                pipeline_mode=pl.Buffered(1))
        except Exception:  # older/newer BlockSpec signature — fall back
            pass
    return pl.BlockSpec(block_shape, index_map)


def _build_conv_toeplitz(sa_w, H, W):
    """(2*HW, HW) matrix folding the 7x7 conv weights AND the zero-padding
    edge masks, so the CBAM spatial conv becomes a single MXU matmul:
        acc = maxp @ T[:HW] + meanp @ T[HW:]        (per batch element)
    Rows 0..HW-1 carry the max-pool taps, rows HW..2HW-1 the mean-pool taps."""
    HW = H * W
    out_h = jnp.arange(H)[:, None]
    out_w = jnp.arange(W)[None, :]
    out_idx = (out_h * W + out_w).reshape(-1)                       # (HW,)
    T = jnp.zeros((2 * HW, HW), jnp.float32)
    for dy in range(7):
        for dx in range(7):
            in_h = out_h + dy - 3
            in_w = out_w + dx - 3
            valid = ((in_h >= 0) & (in_h < H) &
                     (in_w >= 0) & (in_w < W)).reshape(-1)
            in_idx = (jnp.clip(in_h, 0, H - 1) * W +
                      jnp.clip(in_w, 0, W - 1)).reshape(-1)
            for ci in range(2):
                tapw = sa_w[ci, dy, dx]
                T = T.at[ci * HW + in_idx, out_idx].add(
                    jnp.where(valid, tapw, 0.0))
    return T


def _pick_batch_block(N, C, HW, itemsize):
    """Batch elements per grid step: big enough to amortize the ~0.35 us
    per-step overhead, small enough that the double-buffered x/out streams fit
    v7x's 64 MiB/TC VMEM, and leaving >=2 grid steps for the v7x megacore."""
    per_elem = 2 * 2 * C * HW * itemsize          # (x in + out) x double-buffer
    budget = 24 * 1024 * 1024
    nb = max(1, budget // per_elem)
    if N >= 2:
        nb = min(nb, (N + 1) // 2)                # keep >= 2 grid steps
    return int(min(nb, N))


# ----------------------------------------------------------------------------
# Fused kernel: CBAM spatial gate + gating + GAP + CAM.
# One grid step per Nb batch elements; x block is (Nb, C, H*W), H*W on lanes.
# ----------------------------------------------------------------------------
def make_fused_kernel(HW):
    def kernel(x_ref, t_ref, sab_ref, camw_ref,
               sg_ref, out_ref, gap_ref, cam_ref):
        x = x_ref[...]                                   # (Nb, C, HW)
        xf = x.astype(jnp.float32)

        # ---- CBAM spatial branch: channel pooling -----------------------
        # TODO(synk): 'max_softmax' channel pool approximated by max+mean.
        maxp = jnp.max(xf, axis=1)                       # (Nb, HW)
        meanp = jnp.mean(xf, axis=1)                     # (Nb, HW)

        # ---- 7x7 conv (padding=3) as ONE MXU matmul against the
        #      precomputed weight + edge-mask Toeplitz matrix --------------
        acc = (jnp.dot(maxp, t_ref[0:HW, :],
                       preferred_element_type=jnp.float32)
               + jnp.dot(meanp, t_ref[HW:2 * HW, :],
                         preferred_element_type=jnp.float32))    # (Nb, HW)

        sg = jax.nn.sigmoid(acc + sab_ref[0])            # (Nb, HW)
        sg_ref[...] = sg[:, None, :]
        out_ref[...] = (xf * sg[:, None, :]).astype(out_ref.dtype)

        # ---- GAP of the original (ungated) x, lane-dense over C ---------
        gap_ref[...] = jnp.mean(xf, axis=2)[:, None, :]  # (Nb, 1, C)

        # ---- CAM: classifier-row-weighted channel sum (batched MXU) -----
        w = camw_ref[...].astype(jnp.float32)            # (Nb, 1, C)
        cam = jnp.einsum('nkc,ncd->nkd', w, xf,
                         preferred_element_type=jnp.float32)     # (Nb, 1, HW)
        cmin = jnp.min(cam, axis=2, keepdims=True)
        cmax = jnp.max(cam, axis=2, keepdims=True)
        cam_ref[...] = (cam - cmin) / (cmax - cmin + 1e-8)

    return kernel


def fused_call(x_flat, T, sa_b, cam_w):
    N, C, HW = x_flat.shape
    itemsize = jnp.dtype(x_flat.dtype).itemsize
    nb = _pick_batch_block(N, C, HW, itemsize)
    NB = ((N + nb - 1) // nb) * nb
    if NB != N:
        x_flat = jnp.pad(x_flat, ((0, NB - N), (0, 0), (0, 0)))
        cam_w = jnp.pad(cam_w, ((0, NB - N), (0, 0), (0, 0)))

    stream_bytes = 2 * nb * C * HW * itemsize            # x in + out out
    aux_bytes = 2 * HW * HW * 4 + nb * (2 * HW + 2 * C) * 4
    vmem_limit = int(min(100 * 2 ** 20,
                         max(32 * 2 ** 20, 3 * (stream_bytes + aux_bytes))))

    sg, out, gap, cam = pl.pallas_call(
        make_fused_kernel(HW),
        out_shape=(
            jax.ShapeDtypeStruct((NB, 1, HW), jnp.float32),      # sg
            jax.ShapeDtypeStruct((NB, C, HW), x_flat.dtype),     # out = x*sg
            jax.ShapeDtypeStruct((NB, 1, C), jnp.float32),       # gap
            jax.ShapeDtypeStruct((NB, 1, HW), jnp.float32),      # cam
        ),
        grid=(NB // nb,),
        in_specs=[
            pl.BlockSpec((nb, C, HW), lambda n: (n, 0, 0)),            # x
            _single_buffered_spec((2 * HW, HW), lambda n: (0, 0)),     # Toeplitz
            pl.BlockSpec(memory_space=pltpu.MemorySpace.SMEM),         # sa_b
            pl.BlockSpec((nb, 1, C), lambda n: (n, 0, 0)),             # cam_w
        ],
        out_specs=(
            pl.BlockSpec((nb, 1, HW), lambda n: (n, 0, 0)),
            pl.BlockSpec((nb, C, HW), lambda n: (n, 0, 0)),
            pl.BlockSpec((nb, 1, C), lambda n: (n, 0, 0)),
            pl.BlockSpec((nb, 1, HW), lambda n: (n, 0, 0)),
        ),
        compiler_params=pltpu.CompilerParams(
            dimension_semantics=("parallel",),
            vmem_limit_bytes=vmem_limit),
    )(x_flat, T, sa_b, cam_w)
    return sg[:N], out[:N], gap[:N], cam[:N]


# ----------------------------------------------------------------------------
# MLP kernel: fc1 -> ReLU -> fc2 -> ReLU -> classifier (all MXU matmuls)
# ----------------------------------------------------------------------------
def mlp_kernel(g_ref, w1_ref, b1_ref, w2_ref, b2_ref, wc_ref, bc_ref,
               emb_ref, logit_ref):
    g = g_ref[...].astype(w1_ref.dtype)                           # (M, C)
    h1 = jnp.maximum(
        jnp.dot(g, w1_ref[...], preferred_element_type=jnp.float32)
        + b1_ref[...], 0.0)
    # TODO(synk): nn.Dropout(p=0.1) in training mode treated as identity.
    h2 = jnp.maximum(
        jnp.dot(h1.astype(w2_ref.dtype), w2_ref[...],
                preferred_element_type=jnp.float32)
        + b2_ref[...], 0.0)
    emb_ref[...] = h2
    logit_ref[...] = (
        jnp.dot(h2.astype(wc_ref.dtype), wc_ref[...],
                preferred_element_type=jnp.float32)
        + bc_ref[...])


def mlp_call(gap, w1, b1, w2, b2, wc, bc, *, compute_dtype=jnp.float32):
    N, C = gap.shape
    S = wc.shape[1]
    # One large batch block (<=256 rows); 8-row tiles leave the MXU ~97% idle.
    tile_m = min(256, ((N + 7) // 8) * 8)
    NP = ((N + tile_m - 1) // tile_m) * tile_m
    gp = jnp.pad(gap, ((0, NP - N), (0, 0)))
    w1c = w1.astype(compute_dtype)
    w2c = w2.astype(compute_dtype)
    wcc = wc.astype(compute_dtype)
    wbytes = jnp.dtype(compute_dtype).itemsize
    vmem_limit = int(min(100 * 2 ** 20, max(
        32 * 2 ** 20,
        4 * (tile_m * (2 * C + S) * 4 + (2 * C * C + C * S) * wbytes))))

    emb, logits = pl.pallas_call(
        mlp_kernel,
        out_shape=(
            jax.ShapeDtypeStruct((NP, C), jnp.float32),
            jax.ShapeDtypeStruct((NP, S), jnp.float32),
        ),
        grid=(NP // tile_m,),
        in_specs=[
            pl.BlockSpec((tile_m, C), lambda i: (i, 0)),
            _single_buffered_spec((C, C), lambda i: (0, 0)),
            _single_buffered_spec((1, C), lambda i: (0, 0)),
            _single_buffered_spec((C, C), lambda i: (0, 0)),
            _single_buffered_spec((1, C), lambda i: (0, 0)),
            _single_buffered_spec((C, S), lambda i: (0, 0)),
            _single_buffered_spec((1, S), lambda i: (0, 0)),
        ],
        out_specs=(
            pl.BlockSpec((tile_m, C), lambda i: (i, 0)),
            pl.BlockSpec((tile_m, S), lambda i: (i, 0)),
        ),
        compiler_params=pltpu.CompilerParams(
            dimension_semantics=("parallel",),
            vmem_limit_bytes=vmem_limit),
    )(gp, w1c, b1, w2c, b2, wcc, bc)
    return emb[:N], logits[:N]


# ----------------------------------------------------------------------------
# Forward wrapper (fde_type='base', training=True)
# ----------------------------------------------------------------------------
def fea_dis_forward(params, x, signer, *, feature_dtype=jnp.float32,
                    mlp_dtype=jnp.float32):
    N, C, H, W = x.shape
    HW = H * W
    # TODO(synk): if H*W is not a multiple of 128 (e.g. 14x14), pad HW to a
    #             multiple of 128 and regenerate the Toeplitz matrix for the
    #             padded layout so the big out=x*sg store stays lane-dense.

    x_flat = x.reshape(N, C, HW).astype(feature_dtype)       # lane-dense layout
    T = _build_conv_toeplitz(params["sa_w"], H, W)           # conv as matmul

    cam_w = jnp.take(params["cls_w"], signer, axis=0)        # (N, C)
    # channel_cam hoisted out of the kernel (depends only on cls_w, not x).
    wmin = cam_w.min(axis=1, keepdims=True)
    wmax = cam_w.max(axis=1, keepdims=True)
    channel_cam = ((cam_w - wmin) / (wmax - wmin + 1e-8)).reshape(N, C, 1, 1)

    sg_f, out_f, gap_f, cam_f = fused_call(
        x_flat, T, params["sa_b"], cam_w.reshape(N, 1, C))

    sg = sg_f.reshape(N, 1, H, W)
    out = out_f.reshape(N, C, H, W)
    gap = gap_f.reshape(N, C)
    cam = cam_f.reshape(N, 1, H, W)

    # TODO(synk): GradReverse is identity in the forward pass.
    emb, logits = mlp_call(gap, params["fc1_w"], params["fc1_b"],
                           params["fc2_w"], params["fc2_b"],
                           params["cls_w"].T, params["cls_b"],
                           compute_dtype=mlp_dtype)

    sg2 = None   # only for 'dual_spat'
    cg = None    # CBAM built with no_channel=True -> no channel gate
    return ((sg, sg2, cam), (cg, channel_cam), emb, logits, out)


# ----------------------------------------------------------------------------
# Pure-JAX reference (same semantics / approximations) for validation
# ----------------------------------------------------------------------------
def _ref_forward(params, x, signer):
    N, C, H, W = x.shape
    maxp = jnp.max(x, axis=1)
    meanp = jnp.mean(x, axis=1)
    pools = jnp.stack([maxp, meanp], axis=1)                   # (N,2,H,W)
    padded = jnp.pad(pools, ((0, 0), (0, 0), (3, 3), (3, 3)))
    wsa = params["sa_w"]
    acc = jnp.zeros((N, H, W), jnp.float32)
    for ci in range(2):
        for dy in range(7):
            for dx in range(7):
                acc = acc + wsa[ci, dy, dx] * padded[:, ci, dy:dy + H, dx:dx + W]
    sg = jax.nn.sigmoid(acc + params["sa_b"][0])[:, None]      # (N,1,H,W)
    out = x * sg
    gap = jnp.mean(x, axis=(2, 3))
    hp = jax.lax.Precision.HIGHEST
    h1 = jnp.maximum(jnp.dot(gap, params["fc1_w"], precision=hp)
                     + params["fc1_b"], 0.0)
    h2 = jnp.maximum(jnp.dot(h1, params["fc2_w"], precision=hp)
                     + params["fc2_b"], 0.0)
    logits = jnp.dot(h2, params["cls_w"].T, precision=hp) + params["cls_b"]
    cam_w = params["cls_w"][signer]                            # (N, C)
    wmin = cam_w.min(axis=1, keepdims=True)
    wmax = cam_w.max(axis=1, keepdims=True)
    ccam = ((cam_w - wmin) / (wmax - wmin + 1e-8))[:, :, None, None]
    cam = (x * cam_w[:, :, None, None]).sum(axis=1, keepdims=True)
    cmin = cam.min(axis=(2, 3), keepdims=True)
    cmax = cam.max(axis=(2, 3), keepdims=True)
    cam = (cam - cmin) / (cmax - cmin + 1e-8)
    return sg, out, gap, h2, logits, ccam, cam


# ----------------------------------------------------------------------------
# Deterministic parameter init (synthetic; shapes follow FeaDis.__init__)
# ----------------------------------------------------------------------------
def init_params(num_channels, num_signers, key):
    k = jax.random.split(key, 6)
    C, S = num_channels, num_signers
    scale = 1.0 / math.sqrt(C)
    return {
        # CBAM spatial conv: Conv2d(2, 1, kernel_size=7, padding=3)
        "sa_w": jax.random.normal(k[0], (2, 7, 7), jnp.float32) * 0.1,
        "sa_b": jnp.full((1,), 0.01, jnp.float32),
        # fc1 / fc2 stored as (in, out); PyTorch nn.Linear stores (out, in) —
        # transpose when loading real checkpoints.
        "fc1_w": jax.random.normal(k[1], (C, C), jnp.float32) * scale,
        "fc1_b": jnp.zeros((1, C), jnp.float32),
        "fc2_w": jax.random.normal(k[2], (C, C), jnp.float32) * scale,
        "fc2_b": jnp.zeros((1, C), jnp.float32),
        # cls_weight = torch.rand(num_signers, num_channels), cls_bias = zeros
        "cls_w": jax.random.uniform(k[3], (S, C), jnp.float32),
        "cls_b": jnp.zeros((1, S), jnp.float32),
    }


if __name__ == "__main__":
    N, C, H, W = 2, 8, 16, 16
    num_signers = 8

    key = jax.random.PRNGKey(0)
    kx, kp = jax.random.split(key)
    x = jax.random.normal(kx, (N, C, H, W), jnp.float32)
    signer = jnp.array([1, 3], jnp.int32)
    params = init_params(C, num_signers, kp)

    # ---- f32 run: full correctness check -------------------------------
    (sg, sg2, cam), (cg, channel_cam), emb, logits, out = fea_dis_forward(
        params, x, signer)
    for a in (sg, cam, channel_cam, emb, logits, out):
        jax.block_until_ready(a)

    assert sg.shape == (N, 1, H, W)
    assert cam.shape == (N, 1, H, W)
    assert channel_cam.shape == (N, C, 1, 1)
    assert emb.shape == (N, C)
    assert logits.shape == (N, num_signers)
    assert out.shape == (N, C, H, W)

    r_sg, r_out, r_gap, r_emb, r_logits, r_ccam, r_cam = _ref_forward(
        params, x, signer)

    def md(a, b):
        return float(jnp.max(jnp.abs(a.astype(jnp.float32) - b)))

    tol = 1e-2
    assert md(sg, r_sg) < tol, "sg mismatch"
    assert md(out, r_out) < tol, "out mismatch"
    assert md(emb, r_emb) < tol, "emb mismatch"
    assert md(logits, r_logits) < tol, "logits mismatch"
    assert md(channel_cam, r_ccam) < tol, "channel_cam mismatch"
    assert md(cam, r_cam) < tol, "cam mismatch"

    # ---- bf16 feature-path smoke check (loose tolerance) ---------------
    (sg_b, _, cam_b), (_, ccam_b), emb_b, logits_b, out_b = fea_dis_forward(
        params, x, signer, feature_dtype=jnp.bfloat16, mlp_dtype=jnp.bfloat16)
    for a in (sg_b, cam_b, emb_b, logits_b, out_b):
        jax.block_until_ready(a)
    btol = 0.25
    assert md(sg_b, r_sg) < btol, "bf16 sg mismatch"
    assert md(out_b, r_out) < btol, "bf16 out mismatch"
    assert md(emb_b, r_emb) < btol, "bf16 emb mismatch"
    assert md(logits_b, r_logits) < btol, "bf16 logits mismatch"
    assert md(cam_b, r_cam) < btol, "bf16 cam mismatch"

    print("KERNEL_OK")
</pallas_src>

<mosaic_0001>
module attributes {stable_mosaic.version = 11 : i64} {
  func.func @kernel(%arg0: i32, %arg1: memref<1x8x256xf32, #tpu.memory_space<vmem>>, %arg2: memref<512x256xf32, #tpu.memory_space<vmem>>, %arg3: memref<1xf32, #tpu.memory_space<smem>>, %arg4: memref<1x1x8xf32, #tpu.memory_space<vmem>>, %arg5: memref<1x1x256xf32, #tpu.memory_space<vmem>>, %arg6: memref<1x8x256xf32, #tpu.memory_space<vmem>>, %arg7: memref<1x1x8xf32, #tpu.memory_space<vmem>>, %arg8: memref<1x1x256xf32, #tpu.memory_space<vmem>>) attributes {dimension_semantics = [#tpu.dimension_semantics<parallel>], iteration_bounds = array<i64: 2>, scalar_prefetch = 0 : i64, scratch_operands = 0 : i64, tpu.core_type = #tpu.core_type<tc>, window_params = [{transform_indices = @transform_0, window_bounds = array<i64: 1, 8, 256>}, {pipeline_mode = #tpu.pipeline_mode<synchronous>, transform_indices = @transform_1, window_bounds = array<i64: 512, 256>}, {transform_indices = @transform_2, window_bounds = array<i64: 1>}, {transform_indices = @transform_3, window_bounds = array<i64: 1, 1, 8>}, {transform_indices = @transform_4, window_bounds = array<i64: 1, 1, 256>}, {transform_indices = @transform_5, window_bounds = array<i64: 1, 8, 256>}, {transform_indices = @transform_6, window_bounds = array<i64: 1, 1, 8>}, {transform_indices = @transform_7, window_bounds = array<i64: 1, 1, 256>}]} {
    %c0 = arith.constant 0 : index
    %c0_0 = arith.constant 0 : index
    %c0_1 = arith.constant 0 : index
    %0 = vector.load %arg1[%c0, %c0_0, %c0_1] : memref<1x8x256xf32, #tpu.memory_space<vmem>>, vector<1x8x256xf32>
    %cst = arith.constant dense<0xFF800000> : vector<1x256xf32>
    %1 = vector.multi_reduction <maximumf>, %0, %cst [1] : vector<1x8x256xf32> to vector<1x256xf32>
    %cst_2 = arith.constant dense<0.000000e+00> : vector<1x256xf32>
    %2 = vector.multi_reduction <add>, %0, %cst_2 [1] : vector<1x8x256xf32> to vector<1x256xf32>
    %cst_3 = arith.constant 8.000000e+00 : f32
    %3 = vector.broadcast %cst_3 : f32 to vector<1x256xf32>
    %4 = arith.divf %2, %3 : vector<1x256xf32>
    %c0_4 = arith.constant 0 : index
    %c0_5 = arith.constant 0 : index
    %5 = vector.load %arg2[%c0_4, %c0_5] : memref<512x256xf32, #tpu.memory_space<vmem>>, vector<256x256xf32>
    %cst_6 = arith.constant dense<0.000000e+00> : vector<1x256xf32>
    %6 = tpu.matmul %1, %5, %cst_6 {dimension_numbers = #tpu.dot_dimension_numbers<[1], [0], [0], [1], [0, 0, 1, 1], [], []>} : vector<1x256xf32>, vector<256x256xf32>, vector<1x256xf32> -> vector<1x256xf32>
    %c256 = arith.constant 256 : index
    %c0_7 = arith.constant 0 : index
    %7 = vector.load %arg2[%c256, %c0_7] : memref<512x256xf32, #tpu.memory_space<vmem>>, vector<256x256xf32>
    %cst_8 = arith.constant dense<0.000000e+00> : vector<1x256xf32>
    %8 = tpu.matmul %4, %7, %cst_8 {dimension_numbers = #tpu.dot_dimension_numbers<[1], [0], [0], [1], [0, 0, 1, 1], [], []>} : vector<1x256xf32>, vector<256x256xf32>, vector<1x256xf32> -> vector<1x256xf32>
    %9 = arith.addf %6, %8 : vector<1x256xf32>
    %c0_9 = arith.constant 0 : index
    %10 = memref.load %arg3[%c0_9] : memref<1xf32, #tpu.memory_space<smem>>
    %11 = vector.broadcast %10 : f32 to vector<1x256xf32>
    %12 = arith.addf %9, %11 : vector<1x256xf32>
    %13 = arith.negf %12 : vector<1x256xf32>
    %14 = math.exp %13 : vector<1x256xf32>
    %cst_10 = arith.constant 1.000000e+00 : f32
    %15 = vector.broadcast %cst_10 : f32 to vector<1x256xf32>
    %16 = arith.addf %15, %14 : vector<1x256xf32>
    %17 = arith.divf %15, %16 : vector<1x256xf32>
    %18 = vector.shape_cast %17 : vector<1x256xf32> to vector<1x1x256xf32>
    %c0_11 = arith.constant 0 : index
    %c0_12 = arith.constant 0 : index
    %c0_13 = arith.constant 0 : index
    %19 = vector.load %arg5[%c0_11, %c0_12, %c0_13] : memref<1x1x256xf32, #tpu.memory_space<vmem>>, vector<1x1x256xf32>
    tpu.vector_store %arg5[%c0_11, %c0_12, %c0_13], %18 {strides = array<i32>} : memref<1x1x256xf32, #tpu.memory_space<vmem>>, vector<1x1x256xf32>,
    %20 = vector.shape_cast %17 : vector<1x256xf32> to vector<1x1x256xf32>
    %21 = vector.broadcast %20 : vector<1x1x256xf32> to vector<1x8x256xf32>
    %22 = arith.mulf %0, %21 : vector<1x8x256xf32>
    %c0_14 = arith.constant 0 : index
    %c0_15 = arith.constant 0 : index
    %c0_16 = arith.constant 0 : index
    %23 = vector.load %arg6[%c0_14, %c0_15, %c0_16] : memref<1x8x256xf32, #tpu.memory_space<vmem>>, vector<1x8x256xf32>
    tpu.vector_store %arg6[%c0_14, %c0_15, %c0_16], %22 {strides = array<i32>} : memref<1x8x256xf32, #tpu.memory_space<vmem>>, vector<1x8x256xf32>,
    %cst_17 = arith.constant dense<0.000000e+00> : vector<1x8xf32>
    %24 = vector.multi_reduction <add>, %0, %cst_17 [2] : vector<1x8x256xf32> to vector<1x8xf32>
    %cst_18 = arith.constant 2.560000e+02 : f32
    %25 = vector.broadcast %cst_18 : f32 to vector<1x8xf32>
    %26 = arith.divf %24, %25 : vector<1x8xf32>
    %27 = vector.shape_cast %26 : vector<1x8xf32> to vector<1x1x8xf32>
    %c0_19 = arith.constant 0 : index
    %c0_20 = arith.constant 0 : index
    %c0_21 = arith.constant 0 : index
    %28 = vector.load %arg7[%c0_19, %c0_20, %c0_21] : memref<1x1x8xf32, #tpu.memory_space<vmem>>, vector<1x1x8xf32>
    tpu.vector_store %arg7[%c0_19, %c0_20, %c0_21], %27 {strides = array<i32>} : memref<1x1x8xf32, #tpu.memory_space<vmem>>, vector<1x1x8xf32>,
    %c0_22 = arith.constant 0 : index
    %c0_23 = arith.constant 0 : index
    %c0_24 = arith.constant 0 : index
    %29 = vector.load %arg4[%c0_22, %c0_23, %c0_24] : memref<1x1x8xf32, #tpu.memory_space<vmem>>, vector<1x1x8xf32>
    "tpu.trace_start"() <{level = 10 : i32, message = "nkc,ncd->nkd"}> : () -> ()
    %cst_25 = arith.constant dense<0.000000e+00> : vector<1x1x256xf32>
    %30 = tpu.matmul %29, %0, %cst_25 {dimension_numbers = #tpu.dot_dimension_numbers<[2], [1], [1], [2], [0, 0, 0, 1, 1, 2], [0], [0]>} : vector<1x1x8xf32>, vector<1x8x256xf32>, vector<1x1x256xf32> -> vector<1x1x256xf32>
    "tpu.trace_stop"() : () -> ()
    %cst_26 = arith.constant dense<0x7F800000> : vector<1x1xf32>
    %31 = vector.multi_reduction <minimumf>, %30, %cst_26 [2] : vector<1x1x256xf32> to vector<1x1xf32>
    %32 = vector.shape_cast %31 : vector<1x1xf32> to vector<1x1x1xf32>
    %cst_27 = arith.constant dense<0xFF800000> : vector<1x1xf32>
    %33 = vector.multi_reduction <maximumf>, %30, %cst_27 [2] : vector<1x1x256xf32> to vector<1x1xf32>
    %34 = vector.shape_cast %33 : vector<1x1xf32> to vector<1x1x1xf32>
    %35 = vector.broadcast %32 : vector<1x1x1xf32> to vector<1x1x256xf32>
    %36 = arith.subf %30, %35 : vector<1x1x256xf32>
    %37 = arith.subf %34, %32 : vector<1x1x1xf32>
    %cst_28 = arith.constant 9.99999993E-9 : f32
    %38 = vector.broadcast %cst_28 : f32 to vector<1x1x1xf32>
    %39 = arith.addf %37, %38 : vector<1x1x1xf32>
    %40 = vector.broadcast %39 : vector<1x1x1xf32> to vector<1x1x256xf32>
    %41 = arith.divf %36, %40 : vector<1x1x256xf32>
    %c0_29 = arith.constant 0 : index
    %c0_30 = arith.constant 0 : index
    %c0_31 = arith.constant 0 : index
    %42 = vector.load %arg8[%c0_29, %c0_30, %c0_31] : memref<1x1x256xf32, #tpu.memory_space<vmem>>, vector<1x1x256xf32>
    tpu.vector_store %arg8[%c0_29, %c0_30, %c0_31], %41 {strides = array<i32>} : memref<1x1x256xf32, #tpu.memory_space<vmem>>, vector<1x1x256xf32>,
    return
  }
  func.func @transform_0(%arg0: i32) -> (i32, i32, i32) {
    %c0_i32 = arith.constant 0 : i32
    %c0_i32_0 = arith.constant 0 : i32
    %c0_i32_1 = arith.constant 0 : i32
    return %arg0, %c0_i32, %c0_i32_0 : i32, i32, i32
  }
  func.func @transform_1(%arg0: i32) -> (i32, i32) {
    %c0_i32 = arith.constant 0 : i32
    %c0_i32_0 = arith.constant 0 : i32
    %c0_i32_1 = arith.constant 0 : i32
    return %c0_i32, %c0_i32_0 : i32, i32
  }
  func.func @transform_2(%arg0: i32) -> i32 {
    %c0_i32 = arith.constant 0 : i32
    %c0_i32_0 = arith.constant 0 : i32
    return %c0_i32 : i32
  }
  func.func @transform_3(%arg0: i32) -> (i32, i32, i32) {
    %c0_i32 = arith.constant 0 : i32
    %c0_i32_0 = arith.constant 0 : i32
    %c0_i32_1 = arith.constant 0 : i32
    return %arg0, %c0_i32, %c0_i32_0 : i32, i32, i32
  }
  func.func @transform_4(%arg0: i32) -> (i32, i32, i32) {
    %c0_i32 = arith.constant 0 : i32
    %c0_i32_0 = arith.constant 0 : i32
    %c0_i32_1 = arith.constant 0 : i32
    return %arg0, %c0_i32, %c0_i32_0 : i32, i32, i32
  }
  func.func @transform_5(%arg0: i32) -> (i32, i32, i32) {
    %c0_i32 = arith.constant 0 : i32
    %c0_i32_0 = arith.constant 0 : i32
    %c0_i32_1 = arith.constant 0 : i32
    return %arg0, %c0_i32, %c0_i32_0 : i32, i32, i32
  }
  func.func @transform_6(%arg0: i32) -> (i32, i32, i32) {
    %c0_i32 = arith.constant 0 : i32
    %c0_i32_0 = arith.constant 0 : i32
    %c0_i32_1 = arith.constant 0 : i32
    return %arg0, %c0_i32, %c0_i32_0 : i32, i32, i32
  }
  func.func @transform_7(%arg0: i32) -> (i32, i32, i32) {
    %c0_i32 = arith.constant 0 : i32
    %c0_i32_0 = arith.constant 0 : i32
    %c0_i32_1 = arith.constant 0 : i32
    return %arg0, %c0_i32, %c0_i32_0 : i32, i32, i32
  }
}

</mosaic_0001>

<llo_original>
// kernel: tpu_custom_call.1
$region0: #{tpu_custom_call.1}
  #allocation0 [shape = 'u32[]', space=smem, size = 0x4, offset = 0x4, fixed_abs, tag = 'smem constant byte address 0x4 - core index']
  #allocation1 [shape = 'u32[144,128]{1,0:T(1,128)}', space=vmem, size = 0x12000, scoped, tag = 'internal scratch']
  #allocation2 [shape = 'f32[1]{0:T(128)S(6)}', space=smem, size = 0x200, scoped, tag = 'scoped memory for tpu_custom_call.1']
  %s0 = inlined_call_operand.hbm [shape: f32[2,8,256], index: 0, kind: input, shape index: {}]
  %s1 = inlined_call_operand.hbm [shape: f32[512,256], index: 1, kind: input, shape index: {}]
  %s2 = inlined_call_operand.<no memory space> [shape: f32[1], index: 2, kind: input, shape index: {}]
  %s3 = inlined_call_operand.vmem [shape: f32[2,1,8], index: 3, kind: input, shape index: {}]
  %s4 = inlined_call_operand.hbm [shape: f32[2,1,256], index: 4, kind: output, shape index: {0}]
  %s5 = inlined_call_operand.hbm [shape: f32[2,8,256], index: 5, kind: output, shape index: {1}]
  %s6 = inlined_call_operand.hbm [shape: f32[2,1,8], index: 6, kind: output, shape index: {2}]
  %s7 = inlined_call_operand.hbm [shape: f32[2,1,256], index: 7, kind: output, shape index: {3}]
  %8 = xla_tuple %s4, %s5, %s6, %s7
  %s9 = sld [smem:[#allocation0]]
  $region81: #{tpu_custom_call.1} parent=0
    _
  %s11 = ssub.s32 1, %s9
  %s12 = scalar_select 0, %s11, %s9
  %13 = sst [smem:[#allocation2]] %s2
  $region1: #{tpu_custom_call.1} parent=0
    #allocation3 [shape = 'u8[16384]{0}', space=vmem, size = 0x4000, scoped, tag = 'input window, operand 0']
    #allocation4 [shape = 's32[2]{0}', space=sflag, size = 0x8, scoped, tag = 'scoped memory for tpu_custom_call.1']
    #allocation5 [shape = 's32[2]{0}', space=sflag, size = 0x8, scoped, tag = 'scoped memory for tpu_custom_call.1']
    #allocation6 [shape = 'u8[524288]{0}', space=vmem, size = 0x80000, scoped, tag = 'input window, operand 1, single buffered']
    #allocation7 [shape = 's32[1]{0}', space=sflag, size = 0x4, scoped, tag = 'scoped memory for tpu_custom_call.1']
    #allocation8 [shape = 'u8[2048]{0}', space=vmem, size = 0x800, scoped, tag = 'output window, operand 0']
    #allocation9 [shape = 'u8[16384]{0}', space=vmem, size = 0x4000, scoped, tag = 'output window, operand 1']
    #allocation10 [shape = 's32[2]{0}', space=sflag, size = 0x8, scoped, tag = 'scoped memory for tpu_custom_call.1']
    #allocation11 [shape = 'u8[1024]{0}', space=vmem, size = 0x400, scoped, tag = 'output window, operand 2']
    #allocation12 [shape = 'u8[2048]{0}', space=vmem, size = 0x800, scoped, tag = 'output window, operand 3']
    #allocation13 [shape = 's32[2]{0}', space=sflag, size = 0x8, scoped, tag = 'scoped memory for tpu_custom_call.1']
    %14 = vsyncpa [#allocation4], 0
    %s15 = scalar_lea.sflag [#allocation4], 1
    %16 = vsyncpa %s15, 0
    %17 = vsyncpa [#allocation7], 0
    %18 = vsyncpa [#allocation5], 0
    %s19 = scalar_lea.sflag [#allocation5], 1
    %20 = vsyncpa %s19, 0
    %21 = vsyncpa [#allocation10], 0
    %s22 = scalar_lea.sflag [#allocation10], 1
    %23 = vsyncpa %s22, 0
    %24 = vsyncpa [#allocation13], 0
    %s25 = scalar_lea.sflag [#allocation13], 1
    %26 = vsyncpa %s25, 0
    loop: start=0, step=1, limit=4
    $region2: #{tpu_custom_call.1} parent=1 // loop_pre_header
      _
    $region3: #{tpu_custom_call.1} parent=1 // loop_header
      %s28 = sphi 0, %s32
      %p29 = scmp.ge.s32.totalorder %s28, 4
      %s38 = sphi 0, %s40
      %s41 = sphi 0, %s38
      %s42 = sphi 0, %s41
      %s58 = sphi 0, %s42
      %s62 = sphi 0, %s62
      %s64 = sphi 0, %s62
      %s65 = sphi 0, %s64
      %s79 = sphi 0, %s65
      %s83 = sphi 0, %s83
      %s85 = sphi 0, %s83
      %s86 = sphi 0, %s85
      %s100 = sphi 0, %s86
      %s106 = sphi 0, %s108
      %s109 = sphi 0, %s106
      %s110 = sphi 0, %s109
      %s126 = sphi 0, %s110
      %s132 = sphi 0, %s134
      %s135 = sphi 0, %s132
      %s136 = sphi 0, %s135
      %s152 = sphi 0, %s136
      %s158 = sphi 0, %s160
      %s161 = sphi 0, %s158
      %s162 = sphi 0, %s161
      %s178 = sphi 0, %s162
      %s184 = sphi 0, %s186
      %s187 = sphi 0, %s184
      %s188 = sphi 0, %s187
      %s204 = sphi 0, %s188
      %s210 = sphi 0, %s212
      %s213 = sphi 0, %s210
      %s214 = sphi 0, %s213
      %s230 = sphi 0, %s214
    $region4: #{tpu_custom_call.1} parent=1 // loop_header_branch
      %31 = sbr.rel (%p29) target = $region8
    $region5: #{tpu_custom_call.1} parent=1 // loop_body
      %s33 = ssub.s32 %s28, 1
      %s34 = ssub.s32 %s28, 2
      %s35 = sadd.s32 %s28, 1
      %s36 = ssub.s32 %s28, %s35
      %p37 = scmp.eq.s32.totalorder %s36, 0
      %s39 = sadd.s32 %s38, 1
      %s40 = scalar_select %p37, %s38, %s39
      %p43 = pneg %p37
      %p44 = scmp.eq.s32.totalorder %s28, 1
      %p45 = por %p43, %p44
      %p46 = scmp.ne.s32.totalorder %s38, %s41
      %p47 = scmp.eq.s32.totalorder %s28, 0
      %p48 = por %p46, %p47
      %p49 = scmp.ne.s32.totalorder %s38, %s41
      %p50 = scmp.eq.s32.totalorder %s33, 1
      %p51 = por %p49, %p50
      %p52 = scmp.ne.s32.totalorder %s41, %s42
      %p53 = scmp.eq.s32.totalorder %s33, 0
      %p54 = por %p52, %p53
      %p55 = scmp.ne.s32.totalorder %s41, %s42
      %p56 = scmp.eq.s32.totalorder %s34, 1
      %p57 = por %p55, %p56
      %p59 = scmp.ne.s32.totalorder %s42, %s58
      %p60 = scmp.eq.s32.totalorder %s34, 0
      %p61 = por %p59, %p60
      %s63 = sadd.s32 %s62, 1
      %p66 = scmp.eq.s32.totalorder %s28, 1
      %p67 = scmp.ne.s32.totalorder %s62, %s64
      %p68 = scmp.eq.s32.totalorder %s28, 0
      %p69 = por %p67, %p68
      %p70 = scmp.ne.s32.totalorder %s62, %s64
      %p71 = scmp.eq.s32.totalorder %s33, 1
      %p72 = por %p70, %p71
      %p73 = scmp.ne.s32.totalorder %s64, %s65
      %p74 = scmp.eq.s32.totalorder %s33, 0
      %p75 = por %p73, %p74
      %p76 = scmp.ne.s32.totalorder %s64, %s65
      %p77 = scmp.eq.s32.totalorder %s34, 1
      %p78 = por %p76, %p77
      %p80 = scmp.ne.s32.totalorder %s65, %s79
      %p81 = scmp.eq.s32.totalorder %s34, 0
      %p82 = por %p80, %p81
      %s84 = sadd.s32 %s83, 1
      %p87 = scmp.eq.s32.totalorder %s28, 1
      %p88 = scmp.ne.s32.totalorder %s83, %s85
      %p89 = scmp.eq.s32.totalorder %s28, 0
      %p90 = por %p88, %p89
      %p91 = scmp.ne.s32.totalorder %s83, %s85
      %p92 = scmp.eq.s32.totalorder %s33, 1
      %p93 = por %p91, %p92
      %p94 = scmp.ne.s32.totalorder %s85, %s86
      %p95 = scmp.eq.s32.totalorder %s33, 0
      %p96 = por %p94, %p95
      %p97 = scmp.ne.s32.totalorder %s85, %s86
      %p98 = scmp.eq.s32.totalorder %s34, 1
      %p99 = por %p97, %p98
      %p101 = scmp.ne.s32.totalorder %s86, %s100
      %p102 = scmp.eq.s32.totalorder %s34, 0
      %p103 = por %p101, %p102
      %s104 = ssub.s32 %s28, %s35
      %p105 = scmp.eq.s32.totalorder %s104, 0
      %s107 = sadd.s32 %s106, 1
      %s108 = scalar_select %p105, %s106, %s107
      %p111 = pneg %p105
      %p112 = scmp.eq.s32.totalorder %s28, 1
      %p113 = por %p111, %p112
      %p114 = scmp.ne.s32.totalorder %s106, %s109
      %p115 = scmp.eq.s32.totalorder %s28, 0
      %p116 = por %p114, %p115
      %p117 = scmp.ne.s32.totalorder %s106, %s109
      %p118 = scmp.eq.s32.totalorder %s33, 1
      %p119 = por %p117, %p118
      %p120 = scmp.ne.s32.totalorder %s109, %s110
      %p121 = scmp.eq.s32.totalorder %s33, 0
      %p122 = por %p120, %p121
      %p123 = scmp.ne.s32.totalorder %s109, %s110
      %p124 = scmp.eq.s32.totalorder %s34, 1
      %p125 = por %p123, %p124
      %p127 = scmp.ne.s32.totalorder %s110, %s126
      %p128 = scmp.eq.s32.totalorder %s34, 0
      %p129 = por %p127, %p128
      %s130 = ssub.s32 %s28, %s35
      %p131 = scmp.eq.s32.totalorder %s130, 0
      %s133 = sadd.s32 %s132, 1
      %s134 = scalar_select %p131, %s132, %s133
      %p137 = pneg %p131
      %p138 = scmp.eq.s32.totalorder %s28, 1
      %p139 = por %p137, %p138
      %p140 = scmp.ne.s32.totalorder %s132, %s135
      %p141 = scmp.eq.s32.totalorder %s28, 0
      %p142 = por %p140, %p141
      %p143 = scmp.ne.s32.totalorder %s132, %s135
      %p144 = scmp.eq.s32.totalorder %s33, 1
      %p145 = por %p143, %p144
      %p146 = scmp.ne.s32.totalorder %s135, %s136
      %p147 = scmp.eq.s32.totalorder %s33, 0
      %p148 = por %p146, %p147
      %p149 = scmp.ne.s32.totalorder %s135, %s136
      %p150 = scmp.eq.s32.totalorder %s34, 1
      %p151 = por %p149, %p150
      %p153 = scmp.ne.s32.totalorder %s136, %s152
      %p154 = scmp.eq.s32.totalorder %s34, 0
      %p155 = por %p153, %p154
      %s156 = ssub.s32 %s28, %s35
      %p157 = scmp.eq.s32.totalorder %s156, 0
      %s159 = sadd.s32 %s158, 1
      %s160 = scalar_select %p157, %s158, %s159
      %p163 = pneg %p157
      %p164 = scmp.eq.s32.totalorder %s28, 1
      %p165 = por %p163, %p164
      %p166 = scmp.ne.s32.totalorder %s158, %s161
      %p167 = scmp.eq.s32.totalorder %s28, 0
      %p168 = por %p166, %p167
      %p169 = scmp.ne.s32.totalorder %s158, %s161
      %p170 = scmp.eq.s32.totalorder %s33, 1
      %p171 = por %p169, %p170
      %p172 = scmp.ne.s32.totalorder %s161, %s162
      %p173 = scmp.eq.s32.totalorder %s33, 0
      %p174 = por %p172, %p173
      %p175 = scmp.ne.s32.totalorder %s161, %s162
      %p176 = scmp.eq.s32.totalorder %s34, 1
      %p177 = por %p175, %p176
      %p179 = scmp.ne.s32.totalorder %s162, %s178
      %p180 = scmp.eq.s32.totalorder %s34, 0
      %p181 = por %p179, %p180
      %s182 = ssub.s32 %s28, %s35
      %p183 = scmp.eq.s32.totalorder %s182, 0
      %s185 = sadd.s32 %s184, 1
      %s186 = scalar_select %p183, %s184, %s185
      %p189 = pneg %p183
      %p190 = scmp.eq.s32.totalorder %s28, 1
      %p191 = por %p189, %p190
      %p192 = scmp.ne.s32.totalorder %s184, %s187
      %p193 = scmp.eq.s32.totalorder %s28, 0
      %p194 = por %p192, %p193
      %p195 = scmp.ne.s32.totalorder %s184, %s187
      %p196 = scmp.eq.s32.totalorder %s33, 1
      %p197 = por %p195, %p196
      %p198 = scmp.ne.s32.totalorder %s187, %s188
      %p199 = scmp.eq.s32.totalorder %s33, 0
      %p200 = por %p198, %p199
      %p201 = scmp.ne.s32.totalorder %s187, %s188
      %p202 = scmp.eq.s32.totalorder %s34, 1
      %p203 = por %p201, %p202
      %p205 = scmp.ne.s32.totalorder %s188, %s204
      %p206 = scmp.eq.s32.totalorder %s34, 0
      %p207 = por %p205, %p206
      %s208 = ssub.s32 %s28, %s35
      %p209 = scmp.eq.s32.totalorder %s208, 0
      %s211 = sadd.s32 %s210, 1
      %s212 = scalar_select %p209, %s210, %s211
      %p215 = pneg %p209
      %p216 = scmp.eq.s32.totalorder %s28, 1
      %p217 = por %p215, %p216
      %p218 = scmp.ne.s32.totalorder %s210, %s213
      %p219 = scmp.eq.s32.totalorder %s28, 0
      %p220 = por %p218, %p219
      %p221 = scmp.ne.s32.totalorder %s210, %s213
      %p222 = scmp.eq.s32.totalorder %s33, 1
      %p223 = por %p221, %p222
      %p224 = scmp.ne.s32.totalorder %s213, %s214
      %p225 = scmp.eq.s32.totalorder %s33, 0
      %p226 = por %p224, %p225
      %p227 = scmp.ne.s32.totalorder %s213, %s214
      %p228 = scmp.eq.s32.totalorder %s34, 1
      %p229 = por %p227, %p228
      %p231 = scmp.ne.s32.totalorder %s214, %s230
      %p232 = scmp.eq.s32.totalorder %s34, 0
      %p233 = por %p231, %p232
      %p234 = scmp.le.s32.totalorder 1, %s28
      %p235 = scmp.lt.s32.totalorder %s28, 3
      %p236 = pnand %p234, %p235
      %p237 = pneg %p236
      // Predicated region
      $region9: #{tpu_custom_call.1} parent=5 // pred_check
        _
      $region10: #{tpu_custom_call.1} parent=5 // pred_check_branch
        %239 = sbr.rel (%p236) target = $region12
      $region11: #{tpu_custom_call.1} parent=5 // pred_region
        %s240 = ssub.s32 %s28, 1
        // Predicated region
        $region13: #{tpu_custom_call.1} parent=11 // pred_check
          %p241 = pneg %p75
        $region14: #{tpu_custom_call.1} parent=11 // pred_check_branch
          %243 = sbr.rel (%p241) target = $region16
        $region15: #{tpu_custom_call.1} parent=11 // pred_region
          %s245 = ssub.s32 16384, 16384
          %246 = vsyncadd [#allocation7], %s245
          %s247 = sshll.u32 [#allocation6], 4
          %s248 = int_to_ptr.vmem [resolvable:$true] %s247
          %253 = dma.hbm_to_vmem [thread:$0]  %s1, 16384, %s248, [#allocation7], 256, 256, 16
        $region16: #{tpu_custom_call.1} parent=11 // pred_fallthru
          _
        // Predicated region
        $region17: #{tpu_custom_call.1} parent=11 // pred_check
          %p254 = pneg %p96
        $region18: #{tpu_custom_call.1} parent=11 // pred_check_branch
          %256 = sbr.rel (%p254) target = $region20
        $region19: #{tpu_custom_call.1} parent=11 // pred_region
          _
        $region20: #{tpu_custom_call.1} parent=11 // pred_fallthru
          _
      $region12: #{tpu_custom_call.1} parent=5 // pred_fallthru
        _
      %p257 = scmp.lt.s32.totalorder %s28, 2
      // Predicated region
      $region21: #{tpu_custom_call.1} parent=5 // pred_check
        %p258 = pneg %p257
      $region22: #{tpu_custom_call.1} parent=5 // pred_check_branch
        %260 = sbr.rel (%p258) target = $region24
      $region23: #{tpu_custom_call.1} parent=5 // pred_region
        // Predicated region
        $region25: #{tpu_custom_call.1} parent=23 // pred_check
          %p261 = pneg %p48
        $region26: #{tpu_custom_call.1} parent=23 // pred_check_branch
          %263 = sbr.rel (%p261) target = $region28
        $region27: #{tpu_custom_call.1} parent=23 // pred_region
          %s264 = sand.u32 %s38, 1
          %s265 = scalar_lea.sflag [#allocation4], %s264
          %s266 = sand.u32 %s38, 1
          %s267 = smul.addr %s266, 16
          %s268 = scalar_lea.vmem [#allocation3], %s267
          %s270 = ssub.s32 256, 256
          %271 = vsyncadd %s265, %s270
          %s272 = smul.addr %s28, 2
          %s273 = smul.addr %s272, 128
          %s274 = scalar_lea.hbm %s0, %s273
          %s276 = sshll.u32 %s268, 4
          %s277 = int_to_ptr.vmem [resolvable:$true] %s276
          %279 = dma.hbm_to_vmem [thread:$0]  %s274, 256, %s277, %s265
        $region28: #{tpu_custom_call.1} parent=23 // pred_fallthru
          _
        // Predicated region
        $region29: #{tpu_custom_call.1} parent=23 // pred_check
          %p280 = pneg %p116
        $region30: #{tpu_custom_call.1} parent=23 // pred_check_branch
          %282 = sbr.rel (%p280) target = $region32
        $region31: #{tpu_custom_call.1} parent=23 // pred_region
          %p283 = scmp.lt.s32.totalorder %s28, 1
          %s284 = scalar_select %p283, %s28, 1
          %s285 = scalar_lea.vmem %s3, %s284
        $region32: #{tpu_custom_call.1} parent=23 // pred_fallthru
          _
      $region24: #{tpu_custom_call.1} parent=5 // pred_fallthru
        _
      %p286 = scmp.le.s32.totalorder 1, %s28
      %p287 = scmp.lt.s32.totalorder %s28, 3
      %p288 = pnand %p286, %p287
      %p289 = pneg %p288
      // Predicated region
      $region33: #{tpu_custom_call.1} parent=5 // pred_check
        _
      $region34: #{tpu_custom_call.1} parent=5 // pred_check_branch
        %291 = sbr.rel (%p288) target = $region36
      $region35: #{tpu_custom_call.1} parent=5 // pred_region
        %s292 = ssub.s32 %s28, 1
        %s293 = sand.u32 %s41, 1
        %s294 = scalar_lea.sflag [#allocation4], %s293
        %s295 = sand.u32 %s41, 1
        %s296 = smul.addr %s295, 16
        %s297 = scalar_lea.vmem [#allocation3], %s296
        // Predicated region
        $region37: #{tpu_custom_call.1} parent=35 // pred_check
          %p298 = pneg %p54
        $region38: #{tpu_custom_call.1} parent=35 // pred_check_branch
          %300 = sbr.rel (%p298) target = $region40
        $region39: #{tpu_custom_call.1} parent=35 // pred_region
          %301 = dma.done %s294, 256
        $region40: #{tpu_custom_call.1} parent=35 // pred_fallthru
          _
        // Predicated region
        $region41: #{tpu_custom_call.1} parent=35 // pred_check
          %p302 = pneg %p75
        $region42: #{tpu_custom_call.1} parent=35 // pred_check_branch
          %304 = sbr.rel (%p302) target = $region44
        $region43: #{tpu_custom_call.1} parent=35 // pred_region
          %305 = dma.done [#allocation7], 16384
        $region44: #{tpu_custom_call.1} parent=35 // pred_fallthru
          _
        %s306 = sand.u32 %s41, 1
        %s307 = scalar_lea.sflag [#allocation4], %s306
        %s308 = sand.u32 %s41, 1
        %s309 = smul.addr %s308, 16
        %s310 = scalar_lea.vmem [#allocation3], %s309
        %p311 = pneg %p54
        %p312 = pneg %p51
        %p313 = pneg %p75
        %p314 = pneg %p72
        %p315 = pneg %p96
        %p316 = pneg %p93
        %p317 = scmp.lt.s32.totalorder %s33, 1
        %s318 = scalar_select %p317, %s33, 1
        %s319 = scalar_lea.vmem %s3, %s318
        %p320 = pneg %p122
        %p321 = pneg %p119
        %p322 = pneg %p148
        %p323 = pneg %p145
        %s324 = sand.u32 %s135, 1
        %s325 = scalar_lea.sflag [#allocation5], %s324
        %s326 = sand.u32 %s135, 1
        %s327 = smul.addr %s326, 2
        %s328 = scalar_lea.vmem [#allocation8], %s327
        %p329 = pneg %p174
        %p330 = pneg %p171
        %s331 = sand.u32 %s33, 1
        %s332 = scalar_lea.sflag [#allocation10], %s331
        %s333 = sand.u32 %s161, 1
        %s334 = smul.addr %s333, 16
        %s335 = scalar_lea.vmem [#allocation9], %s334
        %p336 = pneg %p200
        %p337 = pneg %p197
        %s338 = sand.u32 %s33, 1
        %s339 = scalar_lea.sflag [#allocation10], %s338
        %s340 = sand.u32 %s187, 1
        %s341 = scalar_lea.vmem [#allocation11], %s340
        %p342 = pneg %p226
        %p343 = pneg %p223
        %s344 = sand.u32 %s213, 1
        %s345 = scalar_lea.sflag [#allocation13], %s344
        %s346 = sand.u32 %s213, 1
        %s347 = smul.addr %s346, 2
        %s348 = scalar_lea.vmem [#allocation12], %s347
        %p349 = scmp.lt.s32.totalorder %s33, 1
        %s350 = scalar_select %p349, %s33, 1
        %s351 = scalar_lea.vmem %s3, %s350
        %v352 = vld [vmem:[%s297] sm:$0xff]
        %v353 = vld [vmem:[%s297 + $0x8] sm:$0xff]
        %v354 = vrot.slane %v352, 4
        %v355 = vmax.f32 %v352, %v354
        %v356 = vrot.slane %v355, 2
        %v357 = vmax.f32 %v355, %v356
        %v358 = vrot.slane %v357, 1
        %v359 = vmax.f32 %v357, %v358
        %v360 = vrot.slane %v353, 4
        %v361 = vmax.f32 %v353, %v360
        %v362 = vrot.slane %v361, 2
        %v363 = vmax.f32 %v361, %v362
        %v364 = vrot.slane %v363, 1
        %v365 = vmax.f32 %v363, %v364
        %v366 = vrot.slane %v352, 4
        %v367 = vadd.f32 %v352, %v366
        %v368 = vrot.slane %v367, 2
        %v369 = vadd.f32 %v367, %v368
        %v370 = vrot.slane %v369, 1
        %v371 = vadd.f32 %v369, %v370
        %v372 = vrot.slane %v353, 4
        %v373 = vadd.f32 %v353, %v372
        %v374 = vrot.slane %v373, 2
        %v375 = vadd.f32 %v373, %v374
        %v376 = vrot.slane %v375, 1
        %v377 = vadd.f32 %v375, %v376
        %v378 = vrcp.pop 8.0
        %v379 = vmul.f32 %v371, %v378
        %v380 = vmul.f32 %v377, %v378
        %v381 = vld [vmem:[#allocation6] sm:$0xff]
        %v382 = vld [vmem:[#allocation6 + $0x8] sm:$0xff]
        %v383 = vld [vmem:[#allocation6 + $0x10] sm:$0xff]
        %v384 = vld [vmem:[#allocation6 + $0x18] sm:$0xff]
        %v385 = vld [vmem:[#allocation6 + $0x20] sm:$0xff]
        %v386 = vld [vmem:[#allocation6 + $0x28] sm:$0xff]
        %v387 = vld [vmem:[#allocation6 + $0x30] sm:$0xff]
        %v388 = vld [vmem:[#allocation6 + $0x38] sm:$0xff]
        %v389 = vld [vmem:[#allocation6 + $0x40] sm:$0xff]
        %v390 = vld [vmem:[#allocation6 + $0x48] sm:$0xff]
        %v391 = vld [vmem:[#allocation6 + $0x50] sm:$0xff]
        %v392 = vld [vmem:[#allocation6 + $0x58] sm:$0xff]
        %v393 = vld [vmem:[#allocation6 + $0x60] sm:$0xff]
        %v394 = vld [vmem:[#allocation6 + $0x68] sm:$0xff]
        %v395 = vld [vmem:[#allocation6 + $0x70] sm:$0xff]
        %v396 = vld [vmem:[#allocation6 + $0x78] sm:$0xff]
        %v397 = vld [vmem:[#allocation6 + $0x80] sm:$0xff]
        %v398 = vld [vmem:[#allocation6 + $0x88] sm:$0xff]
        %v399 = vld [vmem:[#allocation6 + $0x90] sm:$0xff]
        %v400 = vld [vmem:[#allocation6 + $0x98] sm:$0xff]
        %v401 = vld [vmem:[#allocation6 + $0xa0] sm:$0xff]
        %v402 = vld [vmem:[#allocation6 + $0xa8] sm:$0xff]
        %v403 = vld [vmem:[#allocation6 + $0xb0] sm:$0xff]
        %v404 = vld [vmem:[#allocation6 + $0xb8] sm:$0xff]
        %v405 = vld [vmem:[#allocation6 + $0xc0] sm:$0xff]
        %v406 = vld [vmem:[#allocation6 + $0xc8] sm:$0xff]
        %v407 = vld [vmem:[#allocation6 + $0xd0] sm:$0xff]
        %v408 = vld [vmem:[#allocation6 + $0xd8] sm:$0xff]
        %v409 = vld [vmem:[#allocation6 + $0xe0] sm:$0xff]
        %v410 = vld [vmem:[#allocation6 + $0xe8] sm:$0xff]
        %v411 = vld [vmem:[#allocation6 + $0xf0] sm:$0xff]
        %v412 = vld [vmem:[#allocation6 + $0xf8] sm:$0xff]
        %v413 = vld [vmem:[#allocation6 + $0x100] sm:$0xff]
        %v414 = vld [vmem:[#allocation6 + $0x108] sm:$0xff]
        %v415 = vld [vmem:[#allocation6 + $0x110] sm:$0xff]
        %v416 = vld [vmem:[#allocation6 + $0x118] sm:$0xff]
        %v417 = vld [vmem:[#allocation6 + $0x120] sm:$0xff]
        %v418 = vld [vmem:[#allocation6 + $0x128] sm:$0xff]
        %v419 = vld [vmem:[#allocation6 + $0x130] sm:$0xff]
        %v420 = vld [vmem:[#allocation6 + $0x138] sm:$0xff]
        %v421 = vld [vmem:[#allocation6 + $0x140] sm:$0xff]
        %v422 = vld [vmem:[#allocation6 + $0x148] sm:$0xff]
        %v423 = vld [vmem:[#allocation6 + $0x150] sm:$0xff]
        %v424 = vld [vmem:[#allocation6 + $0x158] sm:$0xff]
        %v425 = vld [vmem:[#allocation6 + $0x160] sm:$0xff]
        %v426 = vld [vmem:[#allocation6 + $0x168] sm:$0xff]
        %v427 = vld [vmem:[#allocation6 + $0x170] sm:$0xff]
        %v428 = vld [vmem:[#allocation6 + $0x178] sm:$0xff]
        %v429 = vld [vmem:[#allocation6 + $0x180] sm:$0xff]
        %v430 = vld [vmem:[#allocation6 + $0x188] sm:$0xff]
        %v431 = vld [vmem:[#allocation6 + $0x190] sm:$0xff]
        %v432 = vld [vmem:[#allocation6 + $0x198] sm:$0xff]
        %v433 = vld [vmem:[#allocation6 + $0x1a0] sm:$0xff]
        %v434 = vld [vmem:[#allocation6 + $0x1a8] sm:$0xff]
        %v435 = vld [vmem:[#allocation6 + $0x1b0] sm:$0xff]
        %v436 = vld [vmem:[#allocation6 + $0x1b8] sm:$0xff]
        %v437 = vld [vmem:[#allocation6 + $0x1c0] sm:$0xff]
        %v438 = vld [vmem:[#allocation6 + $0x1c8] sm:$0xff]
        %v439 = vld [vmem:[#allocation6 + $0x1d0] sm:$0xff]
        %v440 = vld [vmem:[#allocation6 + $0x1d8] sm:$0xff]
        %v441 = vld [vmem:[#allocation6 + $0x1e0] sm:$0xff]
        %v442 = vld [vmem:[#allocation6 + $0x1e8] sm:$0xff]
        %v443 = vld [vmem:[#allocation6 + $0x1f0] sm:$0xff]
        %v444 = vld [vmem:[#allocation6 + $0x1f8] sm:$0xff]
        %v445 = vld [vmem:[#allocation6 + $0x200] sm:$0xff]
        %v446 = vld [vmem:[#allocation6 + $0x208] sm:$0xff]
        %v447 = vld [vmem:[#allocation6 + $0x210] sm:$0xff]
        %v448 = vld [vmem:[#allocation6 + $0x218] sm:$0xff]
        %v449 = vld [vmem:[#allocation6 + $0x220] sm:$0xff]
        %v450 = vld [vmem:[#allocation6 + $0x228] sm:$0xff]
        %v451 = vld [vmem:[#allocation6 + $0x230] sm:$0xff]
        %v452 = vld [vmem:[#allocation6 + $0x238] sm:$0xff]
        %v453 = vld [vmem:[#allocation6 + $0x240] sm:$0xff]
        %v454 = vld [vmem:[#allocation6 + $0x248] sm:$0xff]
        %v455 = vld [vmem:[#allocation6 + $0x250] sm:$0xff]
        %v456 = vld [vmem:[#allocation6 + $0x258] sm:$0xff]
        %v457 = vld [vmem:[#allocation6 + $0x260] sm:$0xff]
        %v458 = vld [vmem:[#allocation6 + $0x268] sm:$0xff]
        %v459 = vld [vmem:[#allocation6 + $0x270] sm:$0xff]
        %v460 = vld [vmem:[#allocation6 + $0x278] sm:$0xff]
        %v461 = vld [vmem:[#allocation6 + $0x280] sm:$0xff]
        %v462 = vld [vmem:[#allocation6 + $0x288] sm:$0xff]
        %v463 = vld [vmem:[#allocation6 + $0x290] sm:$0xff]
        %v464 = vld [vmem:[#allocation6 + $0x298] sm:$0xff]
        %v465 = vld [vmem:[#allocation6 + $0x2a0] sm:$0xff]
        %v466 = vld [vmem:[#allocation6 + $0x2a8] sm:$0xff]
        %v467 = vld [vmem:[#allocation6 + $0x2b0] sm:$0xff]
        %v468 = vld [vmem:[#allocation6 + $0x2b8] sm:$0xff]
        %v469 = vld [vmem:[#allocation6 + $0x2c0] sm:$0xff]
        %v470 = vld [vmem:[#allocation6 + $0x2c8] sm:$0xff]
        %v471 = vld [vmem:[#allocation6 + $0x2d0] sm:$0xff]
        %v472 = vld [vmem:[#allocation6 + $0x2d8] sm:$0xff]
        %v473 = vld [vmem:[#allocation6 + $0x2e0] sm:$0xff]
        %v474 = vld [vmem:[#allocation6 + $0x2e8] sm:$0xff]
        %v475 = vld [vmem:[#allocation6 + $0x2f0] sm:$0xff]
        %v476 = vld [vmem:[#allocation6 + $0x2f8] sm:$0xff]
        %v477 = vld [vmem:[#allocation6 + $0x300] sm:$0xff]
        %v478 = vld [vmem:[#allocation6 + $0x308] sm:$0xff]
        %v479 = vld [vmem:[#allocation6 + $0x310] sm:$0xff]
        %v480 = vld [vmem:[#allocation6 + $0x318] sm:$0xff]
        %v481 = vld [vmem:[#allocation6 + $0x320] sm:$0xff]
        %v482 = vld [vmem:[#allocation6 + $0x328] sm:$0xff]
        %v483 = vld [vmem:[#allocation6 + $0x330] sm:$0xff]
        %v484 = vld [vmem:[#allocation6 + $0x338] sm:$0xff]
        %v485 = vld [vmem:[#allocation6 + $0x340] sm:$0xff]
        %v486 = vld [vmem:[#allocation6 + $0x348] sm:$0xff]
        %v487 = vld [vmem:[#allocation6 + $0x350] sm:$0xff]
        %v488 = vld [vmem:[#allocation6 + $0x358] sm:$0xff]
        %v489 = vld [vmem:[#allocation6 + $0x360] sm:$0xff]
        %v490 = vld [vmem:[#allocation6 + $0x368] sm:$0xff]
        %v491 = vld [vmem:[#allocation6 + $0x370] sm:$0xff]
        %v492 = vld [vmem:[#allocation6 + $0x378] sm:$0xff]
        %v493 = vld [vmem:[#allocation6 + $0x380] sm:$0xff]
        %v494 = vld [vmem:[#allocation6 + $0x388] sm:$0xff]
        %v495 = vld [vmem:[#allocation6 + $0x390] sm:$0xff]
        %v496 = vld [vmem:[#allocation6 + $0x398] sm:$0xff]
        %v497 = vld [vmem:[#allocation6 + $0x3a0] sm:$0xff]
        %v498 = vld [vmem:[#allocation6 + $0x3a8] sm:$0xff]
        %v499 = vld [vmem:[#allocation6 + $0x3b0] sm:$0xff]
        %v500 = vld [vmem:[#allocation6 + $0x3b8] sm:$0xff]
        %v501 = vld [vmem:[#allocation6 + $0x3c0] sm:$0xff]
        %v502 = vld [vmem:[#allocation6 + $0x3c8] sm:$0xff]
        %v503 = vld [vmem:[#allocation6 + $0x3d0] sm:$0xff]
        %v504 = vld [vmem:[#allocation6 + $0x3d8] sm:$0xff]
        %v505 = vld [vmem:[#allocation6 + $0x3e0] sm:$0xff]
        %v506 = vld [vmem:[#allocation6 + $0x3e8] sm:$0xff]
        %v507 = vld [vmem:[#allocation6 + $0x3f0] sm:$0xff]
        %v508 = vld [vmem:[#allocation6 + $0x3f8] sm:$0xff]
        %509 = vmatprep.subr.mxu0 %v446
        %510 = vmatpush1.msra.mxu0 %v445
        %511 = vmatprep.subr.mxu0 %v448
        %512 = vmatpush1.msra.mxu0 %v447
        %513 = vmatprep.subr.mxu0 %v450
        %514 = vmatpush1.msra.mxu0 %v449
        %515 = vmatprep.subr.mxu0 %v452
        %516 = vmatpush1.msra.mxu0 %v451
        %517 = vmatprep.subr.mxu0 %v454
        %518 = vmatpush1.msra.mxu0 %v453
        %519 = vmatprep.subr.mxu0 %v456
        %520 = vmatpush1.msra.mxu0 %v455
        %521 = vmatprep.subr.mxu0 %v458
        %522 = vmatpush1.msra.mxu0 %v457
        %523 = vmatprep.subr.mxu0 %v460
        %524 = vmatpush1.msra.mxu0 %v459
        %525 = vmatprep.subr.mxu0 %v462
        %526 = vmatpush1.msra.mxu0 %v461
        %527 = vmatprep.subr.mxu0 %v464
        %528 = vmatpush1.msra.mxu0 %v463
        %529 = vmatprep.subr.mxu0 %v466
        %530 = vmatpush1.msra.mxu0 %v465
        %531 = vmatprep.subr.mxu0 %v468
        %532 = vmatpush1.msra.mxu0 %v467
        %533 = vmatprep.subr.mxu0 %v470
        %534 = vmatpush1.msra.mxu0 %v469
        %535 = vmatprep.subr.mxu0 %v472
        %536 = vmatpush1.msra.mxu0 %v471
        %537 = vmatprep.subr.mxu0 %v474
        %538 = vmatpush1.msra.mxu0 %v473
        %539 = vmatprep.subr.mxu0 %v476
        %540 = vmatpush1.msra.mxu0 %v475
        %541 = vmatprep.subr.mxu0 %v478
        %542 = vmatpush1.msra.mxu0 %v477
        %543 = vmatprep.subr.mxu0 %v480
        %544 = vmatpush1.msra.mxu0 %v479
        %545 = vmatprep.subr.mxu0 %v482
        %546 = vmatpush1.msra.mxu0 %v481
        %547 = vmatprep.subr.mxu0 %v484
        %548 = vmatpush1.msra.mxu0 %v483
        %549 = vmatprep.subr.mxu0 %v486
        %550 = vmatpush1.msra.mxu0 %v485
        %551 = vmatprep.subr.mxu0 %v488
        %552 = vmatpush1.msra.mxu0 %v487
        %553 = vmatprep.subr.mxu0 %v490
        %554 = vmatpush1.msra.mxu0 %v489
        %555 = vmatprep.subr.mxu0 %v492
        %556 = vmatpush1.msra.mxu0 %v491
        %557 = vmatprep.subr.mxu0 %v494
        %558 = vmatpush1.msra.mxu0 %v493
        %559 = vmatprep.subr.mxu0 %v496
        %560 = vmatpush1.msra.mxu0 %v495
        %561 = vmatprep.subr.mxu0 %v498
        %562 = vmatpush1.msra.mxu0 %v497
        %563 = vmatprep.subr.mxu0 %v500
        %564 = vmatpush1.msra.mxu0 %v499
        %565 = vmatprep.subr.mxu0 %v502
        %566 = vmatpush1.msra.mxu0 %v501
        %567 = vmatprep.subr.mxu0 %v504
        %568 = vmatpush1.msra.mxu0 %v503
        %569 = vmatprep.subr.mxu0 %v506
        %570 = vmatpush1.msra.mxu0 %v505
        %571 = vmatprep.subr.mxu0 %v508
        %572 = vmatpush1.msra.mxu0 %v507
        %573 = vmatprep.mubr.f32.mxu0 %v380
        %574 = vmatmul.mubr.f32.gmra.mrb[0].mxu0 %v379
        %v575 = vpop.f32.mrb[0].mxu0
        %v576 = vadd.f32 0.0, %v575
        %v577 = vpop.f32.mrb[0].mxu0
        %v578 = vadd.f32 0.0, %v577
        %579 = vdwg.mxu0
        %580 = vmatprep.subr.mxu0 %v382
        %581 = vmatpush1.msra.mxu0 %v381
        %582 = vmatprep.subr.mxu0 %v384
        %583 = vmatpush1.msra.mxu0 %v383
        %584 = vmatprep.subr.mxu0 %v386
        %585 = vmatpush1.msra.mxu0 %v385
        %586 = vmatprep.subr.mxu0 %v388
        %587 = vmatpush1.msra.mxu0 %v387
        %588 = vmatprep.subr.mxu0 %v390
        %589 = vmatpush1.msra.mxu0 %v389
        %590 = vmatprep.subr.mxu0 %v392
        %591 = vmatpush1.msra.mxu0 %v391
        %592 = vmatprep.subr.mxu0 %v394
        %593 = vmatpush1.msra.mxu0 %v393
        %594 = vmatprep.subr.mxu0 %v396
        %595 = vmatpush1.msra.mxu0 %v395
        %596 = vmatprep.subr.mxu0 %v398
        %597 = vmatpush1.msra.mxu0 %v397
        %598 = vmatprep.subr.mxu0 %v400
        %599 = vmatpush1.msra.mxu0 %v399
        %600 = vmatprep.subr.mxu0 %v402
        %601 = vmatpush1.msra.mxu0 %v401
        %602 = vmatprep.subr.mxu0 %v404
        %603 = vmatpush1.msra.mxu0 %v403
        %604 = vmatprep.subr.mxu0 %v406
        %605 = vmatpush1.msra.mxu0 %v405
        %606 = vmatprep.subr.mxu0 %v408
        %607 = vmatpush1.msra.mxu0 %v407
        %608 = vmatprep.subr.mxu0 %v410
        %609 = vmatpush1.msra.mxu0 %v409
        %610 = vmatprep.subr.mxu0 %v412
        %611 = vmatpush1.msra.mxu0 %v411
        %612 = vmatprep.subr.mxu0 %v414
        %613 = vmatpush1.msra.mxu0 %v413
        %614 = vmatprep.subr.mxu0 %v416
        %615 = vmatpush1.msra.mxu0 %v415
        %616 = vmatprep.subr.mxu0 %v418
        %617 = vmatpush1.msra.mxu0 %v417
        %618 = vmatprep.subr.mxu0 %v420
        %619 = vmatpush1.msra.mxu0 %v419
        %620 = vmatprep.subr.mxu0 %v422
        %621 = vmatpush1.msra.mxu0 %v421
        %622 = vmatprep.subr.mxu0 %v424
        %623 = vmatpush1.msra.mxu0 %v423
        %624 = vmatprep.subr.mxu0 %v426
        %625 = vmatpush1.msra.mxu0 %v425
        %626 = vmatprep.subr.mxu0 %v428
        %627 = vmatpush1.msra.mxu0 %v427
        %628 = vmatprep.subr.mxu0 %v430
        %629 = vmatpush1.msra.mxu0 %v429
        %630 = vmatprep.subr.mxu0 %v432
        %631 = vmatpush1.msra.mxu0 %v431
        %632 = vmatprep.subr.mxu0 %v434
        %633 = vmatpush1.msra.mxu0 %v433
        %634 = vmatprep.subr.mxu0 %v436
        %635 = vmatpush1.msra.mxu0 %v435
        %636 = vmatprep.subr.mxu0 %v438
        %637 = vmatpush1.msra.mxu0 %v437
        %638 = vmatprep.subr.mxu0 %v440
        %639 = vmatpush1.msra.mxu0 %v439
        %640 = vmatprep.subr.mxu0 %v442
        %641 = vmatpush1.msra.mxu0 %v441
        %642 = vmatprep.subr.mxu0 %v444
        %643 = vmatpush1.msra.mxu0 %v443
        %644 = vmatprep.mubr.f32.mxu0 %v365
        %645 = vmatmul.mubr.f32.gmra.mrb[0].mxu0 %v359
        %v646 = vpop.f32.mrb[0].mxu0
        %v647 = vadd.f32 %v576, %v646
        %v648 = vpop.f32.mrb[0].mxu0
        %v649 = vadd.f32 %v578, %v648
        %650 = vdwg.mxu0
        %s651 = sld [smem:[#allocation2]]
        %v652 = vstv %s651
        %v653 = vadd.f32 %v647, %v652
        %v654 = vadd.f32 %v649, %v652
        %v655 = vxor.u32 %v653, 2147483648
        %v656 = vxor.u32 %v654, 2147483648
        %v657 = vmul.f32 %v655, 1.442695
        %v658 = vpow.pop %v657
        %v659 = vmul.f32 %v656, 1.442695
        %v660 = vpow.pop %v659
        %v661 = vadd.f32 %v658, 1.0
        %v662 = vadd.f32 %v660, 1.0
        %v663 = vrcp.pop %v661
        %v664 = vmul.f32 1.0, %v663
        %v665 = vrcp.pop %v662
        %v666 = vmul.f32 1.0, %v665
        %v669 = vcombine.low %v664, %v666
        %v671 = vunpack.c.l.s4 1966171168
        %v672 = vunpack.c.0.s8 %v671
        %v673 = vlaneseq
        %v674 = vshrl.u32 %v673, 7
        %v675 = vsub.s32 %v672, %v674
        %v676 = vrot.slane %v669, %v675
        %v678 = vunpack.c.l.s4 1966171168
        %v679 = vunpack.c.0.s8 %v678
        %v680 = vlaneseq
        %v681 = vshrl.u32 %v680, 7
        %v682 = vsub.s32 %v679, %v681
        %v683 = vrot.slane %v676, %v682
        %v685 = vlaneseq
        %vm686 = vcmp.ge.s32.totalorder %v685, 0
        %vm687 = vcmp.lt.s32.totalorder %v685, 256
        %vm688 = vmand %vm686, %vm687
        %689 = vst.msk [vmem:[%s328] sm:$0x3] %vm688, %v683
        %v690 = vlaneseq
        %v691 = vshrl.u32 %v690, 7
        %v692 = vsub.s32 0, %v691
        %v693 = vrot.slane %v664, %v692
        %v694 = vlaneseq
        %v695 = vshrl.u32 %v694, 7
        %v696 = vsub.s32 0, %v695
        %v697 = vrot.slane %v666, %v696
        %v698 = vmul.f32 %v352, %v693
        %v699 = vmul.f32 %v353, %v697
        %700 = vst [vmem:[%s335] sm:$0xff] %v698
        %701 = vst [vmem:[%s335 + $0x8] sm:$0xff] %v699
        %v702 = vadd.f32 %v352, %v353
        %703 = vadd.xlane.f32.xlu0 %v702
        %v704 = vpop.xlane.xlu0 %703
        %v705 = vrcp.pop 256.0
        %v706 = vmul.f32 %v704, %v705
        %v708 = vlaneseq
        %v709 = vand.u32 %v708, 127
        %v710 = vlaneseq
        %v711 = vshrl.u32 %v710, 7
        %v712 = vsub.s32 %v709, %v711
        %v713 = vrot.slane %v706, %v712
        %vm715 = vcmask 57344
        %716 = vst.msk [vmem:[%s341] sm:$0x1] %vm715, %v713
        %v717 = vld [vmem:[%s351] sm:$0x1]
        %vm718 = vcmask 64512
        %v720 = vsel %vm718, %v717, 0
        %722 = vmatprep.subr.mxu0 %v353
        %723 = vmatpush1.msra.mxu0 %v352
        %724 = vmatprep.subr.mxu0 0.0
        %725 = vmatpush1.msra.mxu0 0.0
        %726 = vmatprep.subr.mxu0 0.0
        %727 = vmatpush1.msra.mxu0 0.0
        %728 = vmatprep.subr.mxu0 0.0
        %729 = vmatpush1.msra.mxu0 0.0
        %730 = vmatprep.subr.mxu0 0.0
        %731 = vmatpush1.msra.mxu0 0.0
        %732 = vmatprep.subr.mxu0 0.0
        %733 = vmatpush1.msra.mxu0 0.0
        %734 = vmatprep.subr.mxu0 0.0
        %735 = vmatpush1.msra.mxu0 0.0
        %736 = vmatprep.subr.mxu0 0.0
        %737 = vmatpush1.msra.mxu0 0.0
        %738 = vmatprep.subr.mxu0 0.0
        %739 = vmatpush1.msra.mxu0 0.0
        %740 = vmatprep.subr.mxu0 0.0
        %741 = vmatpush1.msra.mxu0 0.0
        %742 = vmatprep.subr.mxu0 0.0
        %743 = vmatpush1.msra.mxu0 0.0
        %744 = vmatprep.subr.mxu0 0.0
        %745 = vmatpush1.msra.mxu0 0.0
        %746 = vmatprep.subr.mxu0 0.0
        %747 = vmatpush1.msra.mxu0 0.0
        %748 = vmatprep.subr.mxu0 0.0
        %749 = vmatpush1.msra.mxu0 0.0
        %750 = vmatprep.subr.mxu0 0.0
        %751 = vmatpush1.msra.mxu0 0.0
        %752 = vmatprep.subr.mxu0 0.0
        %753 = vmatpush1.msra.mxu0 0.0
        %754 = vmatprep.subr.mxu0 0.0
        %755 = vmatpush1.msra.mxu0 0.0
        %756 = vmatprep.subr.mxu0 0.0
        %757 = vmatpush1.msra.mxu0 0.0
        %758 = vmatprep.subr.mxu0 0.0
        %759 = vmatpush1.msra.mxu0 0.0
        %760 = vmatprep.subr.mxu0 0.0
        %761 = vmatpush1.msra.mxu0 0.0
        %762 = vmatprep.subr.mxu0 0.0
        %763 = vmatpush1.msra.mxu0 0.0
        %764 = vmatprep.subr.mxu0 0.0
        %765 = vmatpush1.msra.mxu0 0.0
        %766 = vmatprep.subr.mxu0 0.0
        %767 = vmatpush1.msra.mxu0 0.0
        %768 = vmatprep.subr.mxu0 0.0
        %769 = vmatpush1.msra.mxu0 0.0
        %770 = vmatprep.subr.mxu0 0.0
        %771 = vmatpush1.msra.mxu0 0.0
        %772 = vmatprep.subr.mxu0 0.0
        %773 = vmatpush1.msra.mxu0 0.0
        %774 = vmatprep.subr.mxu0 0.0
        %775 = vmatpush1.msra.mxu0 0.0
        %776 = vmatprep.subr.mxu0 0.0
        %777 = vmatpush1.msra.mxu0 0.0
        %778 = vmatprep.subr.mxu0 0.0
        %779 = vmatpush1.msra.mxu0 0.0
        %780 = vmatprep.subr.mxu0 0.0
        %781 = vmatpush1.msra.mxu0 0.0
        %782 = vmatprep.subr.mxu0 0.0
        %783 = vmatpush1.msra.mxu0 0.0
        %784 = vmatprep.subr.mxu0 0.0
        %785 = vmatpush1.msra.mxu0 0.0
        %786 = vmatprep.mubr.f32.mxu0 0.0
        %787 = vmatmul.mubr.f32.gmra.mrb[0].mxu0 %v720
        %v788 = vpop.f32.mrb[0].mxu0
        %v789 = vadd.f32 0.0, %v788
        %v790 = vpop.f32.mrb[0].mxu0
        %v791 = vadd.f32 0.0, %v790
        %792 = vdwg.mxu0
        %vm793 = vcmask 1040384
        %v794 = vsel %vm793, %v789, inf
        %v795 = vsel %vm793, %v791, inf
        %v796 = vmin.f32 %v794, %v795
        %797 = vmin.xlane.f32.xlu0 %v796
        %v798 = vpop.xlane.xlu0 %797
        %v799 = vsel %vm793, %v789, -inf
        %v800 = vsel %vm793, %v791, -inf
        %v801 = vmax.f32 %v799, %v800
        %802 = vmax.xlane.f32.xlu0 %v801
        %v803 = vpop.xlane.xlu0 %802
        %v804 = vsub.f32 %v789, %v798
        %v805 = vsub.f32 %v791, %v798
        %v806 = vsub.f32 %v803, %v798
        %v807 = vadd.f32 %v806, 1e-08
        %v808 = vrcp.pop %v807
        %v809 = vmul.f32 %v804, %v808
        %v810 = vmul.f32 %v805, %v808
        %v813 = vcombine.low %v809, %v810
        %v815 = vunpack.c.l.s4 1966171168
        %v816 = vunpack.c.0.s8 %v815
        %v817 = vlaneseq
        %v818 = vshrl.u32 %v817, 7
        %v819 = vsub.s32 %v816, %v818
        %v820 = vrot.slane %v813, %v819
        %v822 = vunpack.c.l.s4 1966171168
        %v823 = vunpack.c.0.s8 %v822
        %v824 = vlaneseq
        %v825 = vshrl.u32 %v824, 7
        %v826 = vsub.s32 %v823, %v825
        %v827 = vrot.slane %v820, %v826
        %829 = vst.msk [vmem:[%s348] sm:$0x3] %vm688, %v827
        %s830 = sand.u32 %s135, 1
        %s831 = scalar_lea.sflag [#allocation5], %s830
        %s832 = sand.u32 %s135, 1
        %s833 = smul.addr %s832, 2
        %s834 = scalar_lea.vmem [#allocation8], %s833
        %s835 = sand.u32 %s33, 1
        %s836 = scalar_lea.sflag [#allocation10], %s835
        %s837 = sand.u32 %s161, 1
        %s838 = smul.addr %s837, 16
        %s839 = scalar_lea.vmem [#allocation9], %s838
        %s840 = sand.u32 %s33, 1
        %s841 = scalar_lea.sflag [#allocation10], %s840
        %s842 = sand.u32 %s187, 1
        %s843 = scalar_lea.vmem [#allocation11], %s842
        %s844 = sand.u32 %s213, 1
        %s845 = scalar_lea.sflag [#allocation13], %s844
        %s846 = sand.u32 %s213, 1
        %s847 = smul.addr %s846, 2
        %s848 = scalar_lea.vmem [#allocation12], %s847
        // Predicated region
        $region45: #{tpu_custom_call.1} parent=35 // pred_check
          %p849 = pneg %p145
        $region46: #{tpu_custom_call.1} parent=35 // pred_check_branch
          %851 = sbr.rel (%p849) target = $region48
        $region47: #{tpu_custom_call.1} parent=35 // pred_region
          %s853 = ssub.s32 32, 32
          %854 = vsyncadd %s831, %s853
          %s855 = smul.addr %s33, 2
          %s856 = smul.addr %s855, 16
          %s857 = scalar_lea.hbm %s4, %s856
          %s859 = sshll.u32 %s834, 4
          %s860 = int_to_ptr.vmem [resolvable:$true] %s859
          %862 = dma.vmem_to_hbm [thread:$0]  %s860, 32, %s857, %s831
        $region48: #{tpu_custom_call.1} parent=35 // pred_fallthru
          _
        // Predicated region
        $region49: #{tpu_custom_call.1} parent=35 // pred_check
          %p863 = pneg %p171
        $region50: #{tpu_custom_call.1} parent=35 // pred_check_branch
          %865 = sbr.rel (%p863) target = $region52
        $region51: #{tpu_custom_call.1} parent=35 // pred_region
          %s867 = ssub.s32 256, 256
          %868 = vsyncadd %s836, %s867
          %s869 = smul.addr %s33, 2
          %s870 = smul.addr %s869, 128
          %s871 = scalar_lea.hbm %s5, %s870
          %s873 = sshll.u32 %s839, 4
          %s874 = int_to_ptr.vmem [resolvable:$true] %s873
          %876 = dma.vmem_to_hbm [thread:$0]  %s874, 256, %s871, %s836
        $region52: #{tpu_custom_call.1} parent=35 // pred_fallthru
          _
        // Predicated region
        $region53: #{tpu_custom_call.1} parent=35 // pred_check
          %p877 = pneg %p197
        $region54: #{tpu_custom_call.1} parent=35 // pred_check_branch
          %879 = sbr.rel (%p877) target = $region56
        $region55: #{tpu_custom_call.1} parent=35 // pred_region
          %s881 = ssub.s32 16, 16
          %882 = vsyncadd %s841, %s881
          %s883 = smul.addr %s33, 16
          %s884 = scalar_lea.hbm %s6, %s883
          %s886 = sshll.u32 %s843, 4
          %s887 = int_to_ptr.vmem [resolvable:$true] %s886
          %889 = dma.vmem_to_hbm [thread:$0]  %s887, 16, %s884, %s841
        $region56: #{tpu_custom_call.1} parent=35 // pred_fallthru
          _
        // Predicated region
        $region57: #{tpu_custom_call.1} parent=35 // pred_check
          %p890 = pneg %p223
        $region58: #{tpu_custom_call.1} parent=35 // pred_check_branch
          %892 = sbr.rel (%p890) target = $region60
        $region59: #{tpu_custom_call.1} parent=35 // pred_region
          %s894 = ssub.s32 32, 32
          %895 = vsyncadd %s845, %s894
          %s896 = smul.addr %s33, 2
          %s897 = smul.addr %s896, 16
          %s898 = scalar_lea.hbm %s7, %s897
          %s900 = sshll.u32 %s848, 4
          %s901 = int_to_ptr.vmem [resolvable:$true] %s900
          %903 = dma.vmem_to_hbm [thread:$0]  %s901, 32, %s898, %s845
        $region60: #{tpu_custom_call.1} parent=35 // pred_fallthru
          _
      $region36: #{tpu_custom_call.1} parent=5 // pred_fallthru
        _
      %p904 = scmp.le.s32.totalorder 2, %s28
      // Predicated region
      $region61: #{tpu_custom_call.1} parent=5 // pred_check
        %p905 = pneg %p904
      $region62: #{tpu_custom_call.1} parent=5 // pred_check_branch
        %907 = sbr.rel (%p905) target = $region64
      $region63: #{tpu_custom_call.1} parent=5 // pred_region
        %s908 = ssub.s32 %s28, 2
        // Predicated region
        $region65: #{tpu_custom_call.1} parent=63 // pred_check
          %p909 = pneg %p151
        $region66: #{tpu_custom_call.1} parent=63 // pred_check_branch
          %911 = sbr.rel (%p909) target = $region68
        $region67: #{tpu_custom_call.1} parent=63 // pred_region
          %s912 = sand.u32 %s136, 1
          %s913 = scalar_lea.sflag [#allocation5], %s912
          %s914 = sand.u32 %s136, 1
          %s915 = smul.addr %s914, 2
          %s916 = scalar_lea.vmem [#allocation8], %s915
          %917 = dma.done %s913, 32
        $region68: #{tpu_custom_call.1} parent=63 // pred_fallthru
          _
        // Predicated region
        $region69: #{tpu_custom_call.1} parent=63 // pred_check
          %p918 = pneg %p177
        $region70: #{tpu_custom_call.1} parent=63 // pred_check_branch
          %920 = sbr.rel (%p918) target = $region72
        $region71: #{tpu_custom_call.1} parent=63 // pred_region
          %s921 = sand.u32 %s34, 1
          %s922 = scalar_lea.sflag [#allocation10], %s921
          %s923 = sand.u32 %s162, 1
          %s924 = smul.addr %s923, 16
          %s925 = scalar_lea.vmem [#allocation9], %s924
          %926 = dma.done %s922, 256
        $region72: #{tpu_custom_call.1} parent=63 // pred_fallthru
          _
        // Predicated region
        $region73: #{tpu_custom_call.1} parent=63 // pred_check
          %p927 = pneg %p203
        $region74: #{tpu_custom_call.1} parent=63 // pred_check_branch
          %929 = sbr.rel (%p927) target = $region76
        $region75: #{tpu_custom_call.1} parent=63 // pred_region
          %s930 = sand.u32 %s34, 1
          %s931 = scalar_lea.sflag [#allocation10], %s930
          %s932 = sand.u32 %s188, 1
          %s933 = scalar_lea.vmem [#allocation11], %s932
          %934 = dma.done %s931, 16
        $region76: #{tpu_custom_call.1} parent=63 // pred_fallthru
          _
        // Predicated region
        $region77: #{tpu_custom_call.1} parent=63 // pred_check
          %p935 = pneg %p229
        $region78: #{tpu_custom_call.1} parent=63 // pred_check_branch
          %937 = sbr.rel (%p935) target = $region80
        $region79: #{tpu_custom_call.1} parent=63 // pred_region
          %s938 = sand.u32 %s214, 1
          %s939 = scalar_lea.sflag [#allocation13], %s938
          %s940 = sand.u32 %s214, 1
          %s941 = smul.addr %s940, 2
          %s942 = scalar_lea.vmem [#allocation12], %s941
          %943 = dma.done %s939, 32
        $region80: #{tpu_custom_call.1} parent=63 // pred_fallthru
          _
      $region64: #{tpu_custom_call.1} parent=5 // pred_fallthru
        _
    $region6: #{tpu_custom_call.1} parent=1 // loop_footer
      %s32 = sadd.s32 1, %s28
    $region7: #{tpu_custom_call.1} parent=1 // loop_footer_branch
      %27 = sbr.rel target = $region3
    $region8: #{tpu_custom_call.1} parent=1 // loop_exit
      _
    %944 = vsyncpa [#allocation4], 1
    %s945 = scalar_lea.sflag [#allocation4], 1
    %946 = vsyncpa %s945, 1
    %947 = vsyncpa [#allocation7], 1
    %948 = vsyncpa [#allocation5], 1
    %s949 = scalar_lea.sflag [#allocation5], 1
    %950 = vsyncpa %s949, 1
    %951 = vsyncpa [#allocation10], 1
    %s952 = scalar_lea.sflag [#allocation10], 1
    %953 = vsyncpa %s952, 1
    %954 = vsyncpa [#allocation13], 1
    %s955 = scalar_lea.sflag [#allocation13], 1
    %956 = vsyncpa %s955, 1

</llo_original>
